<compile_context>
chip_gen: v7x
topology: tpu7x:2x2x1
jax: 0.10.0
libtpu: 0.0.40
codegen_flags: <defaults>
</compile_context>

<pallas_src>
import functools

import numpy as np
import jax
import jax.numpy as jnp
from jax.experimental import pallas as pl
from jax.experimental.pallas import tpu as pltpu

LANE = 128
SUBLANE = 8
_TILE_CANDS = (8192, 4096, 2048, 1024, 512, 256, 128)


def _round_up(x, m):
    return ((x + m - 1) // m) * m


# ----------------------------------------------------------------------------
# Per-chip budget + tile planning.
# ----------------------------------------------------------------------------
def _chip_budget():
    """VMEM limit + max tiles per generation (v7x: 64 MiB physical, v5e/v6e: 128)."""
    vmem_phys = 64 * 1024 * 1024
    try:
        info = pltpu.get_tpu_info()
        vmem_phys = int(getattr(info, "vmem_capacity_bytes", vmem_phys))
    except Exception:
        pass
    if vmem_phys >= 100 * 1024 * 1024:          # v5e / v6e (128 MiB physical VMEM)
        return {"vmem_limit": 100 * 1024 * 1024,
                "max_tile_k": 8192, "max_tile_m": 2048}
    # v7x (64 MiB physical VMEM): keep the scoped limit well below physical.
    return {"vmem_limit": 52 * 1024 * 1024,
            "max_tile_k": 4096, "max_tile_m": 1024}


def _largest_divisor_tile(padded, cap):
    """Largest lane tile (multiple of 128) <= cap dividing `padded`."""
    if padded <= cap:
        return padded
    for c in _TILE_CANDS:
        if c <= cap and padded % c == 0:
            return c
    return LANE


def _dim_plan(dim, max_k_tile, max_n_tile):
    """Pad a lane dimension and pick its K-role / N-role tiles (both divide it).

    One padded size per dim keeps the two matmuls consistent: M is the N-dim of
    the forward projection and the K-dim of the backprojection (and vice versa
    for P).  Padding goes to a multiple of the tile so big shapes always use
    full-size tiles."""
    d = _round_up(dim, LANE)
    if d <= max_n_tile:
        padded = d
    elif d <= max_k_tile:
        padded = _round_up(dim, max_n_tile)
    else:
        padded = _round_up(dim, max_k_tile)
    k_tile = _largest_divisor_tile(padded, max_k_tile)
    n_tile = _largest_divisor_tile(padded, max_n_tile)
    # Prefer >= 2 output tiles so v7x's two TensorCores can split the "parallel" axis.
    if n_tile == padded and padded >= 512 and padded % 256 == 0:
        n_tile = padded // 2
    return padded, k_tile, n_tile


def _shrink_k_for_vmem(k_tile, n_tile, k_pad, rows, vmem_limit, out_bytes):
    """Halve the K tile until double-buffered W + resident LHS + epilogue fit."""
    def usage(tk):
        w = 2 * tk * n_tile * 2                  # double-buffered bf16 W^T tile
        lhs = 2 * rows * k_pad * 2               # resident bf16 LHS (conservative x2)
        acc = rows * n_tile * 4
        io = 2 * rows * n_tile * (4 + out_bytes) + 2 * n_tile * 4
        return w + lhs + acc + io
    while (usage(k_tile) > 0.85 * vmem_limit and k_tile >= 256
           and k_tile % 256 == 0):
        k_tile //= 2
    return k_tile


# ----------------------------------------------------------------------------
# Geometry setup (glue, plain JAX, runs once at init).
# ----------------------------------------------------------------------------
def build_fanbeam_system_matrix(n, angles, d_source, n_detect, s_detect,
                                n_samples):
    """Dense A with shape (n_angles * n_detect, n * n), float32."""
    n_angles = angles.shape[0]
    M = n_angles * n_detect

    cos_a = jnp.cos(angles)[:, None]
    sin_a = jnp.sin(angles)[:, None]

    sx = d_source * cos_a
    sy = d_source * sin_a

    t = (jnp.arange(n_detect, dtype=jnp.float32)
         - (n_detect - 1) / 2.0) * s_detect
    dx = -t[None, :] * sin_a
    dy = t[None, :] * cos_a

    ux = dx - sx
    uy = dy - sy
    norm = jnp.sqrt(ux * ux + uy * uy)
    ux = ux / norm
    uy = uy / norm

    t0 = -(sx * ux + sy * uy)
    px = sx + t0 * ux
    py = sy + t0 * uy
    radius = n / jnp.sqrt(2.0)
    h = jnp.sqrt(jnp.maximum(radius * radius - (px * px + py * py), 0.0))
    step = 2.0 * h / n_samples

    frac = (jnp.arange(n_samples, dtype=jnp.float32) + 0.5) / n_samples
    tk = (t0 - h)[..., None] + (2.0 * h)[..., None] * frac
    qx = sx[..., None] + tk * ux[..., None]
    qy = sy[..., None] + tk * uy[..., None]

    fy = qy + (n - 1) / 2.0
    fx = qx + (n - 1) / 2.0
    r0f = jnp.floor(fy)
    c0f = jnp.floor(fx)
    wy = fy - r0f
    wx = fx - c0f
    r0 = r0f.astype(jnp.int32)
    c0 = c0f.astype(jnp.int32)
    r1 = r0 + 1
    c1 = c0 + 1

    ray = jnp.broadcast_to(
        jnp.arange(M, dtype=jnp.int32).reshape(n_angles, n_detect, 1),
        (n_angles, n_detect, n_samples)).reshape(-1)

    A = jnp.zeros((M, n * n), dtype=jnp.float32)
    for ri, ci, w in (
        (r0, c0, (1.0 - wy) * (1.0 - wx)),
        (r0, c1, (1.0 - wy) * wx),
        (r1, c0, wy * (1.0 - wx)),
        (r1, c1, wy * wx),
    ):
        valid = (ri >= 0) & (ri < n) & (ci >= 0) & (ci < n)
        pix = (jnp.clip(ri, 0, n - 1) * n + jnp.clip(ci, 0, n - 1)).reshape(-1)
        ww = (jnp.where(valid, w, 0.0) * step[..., None]).reshape(-1)
        A = A.at[ray, pix].add(ww)
    return A


def build_fbp_matrix(A, n, n_angles, n_detect, s_detect):
    """Approximate inverse (Ram-Lak filtered adjoint), shape (n*n, M)."""
    idx = jnp.arange(n_detect, dtype=jnp.int32)
    diff = idx[:, None] - idx[None, :]
    diff_f = diff.astype(jnp.float32)
    odd = (diff % 2) != 0
    denom = jnp.where(diff == 0, 1.0, diff_f * diff_f)
    h = jnp.where(diff == 0, 1.0 / (4.0 * s_detect * s_detect),
                  jnp.where(odd, -1.0 / (jnp.pi ** 2 * denom * s_detect ** 2),
                            0.0))
    F = h * s_detect
    AT = jnp.transpose(A).reshape(n * n, n_angles, n_detect)
    B = jnp.einsum('pai,ij->paj', AT, F)
    c = jnp.pi / n_angles
    return (c * B).reshape(n * n, n_angles * n_detect)


# ----------------------------------------------------------------------------
# Weight pre-blocking + block-sparsity tables (init-time, numpy).
# ----------------------------------------------------------------------------
def _preblock_and_tables(w_t, tile_k, tile_m):
    """Pre-block W^T (K_pad, N_pad) into contiguous (tile_k, tile_m) HBM tiles
    and build block-sparsity tables.

    Returns (blocked (NK*NJ, tile_k, tile_m) bf16, kidx flat (NJ*nt,) int32,
    counts (NJ,) int32, nt, NJ).  Flat W block index = k_block * NJ + j."""
    k_pad, n_pad = w_t.shape
    nk, nj = k_pad // tile_k, n_pad // tile_m
    w4 = np.asarray(w_t, np.float32).reshape(nk, tile_k, nj, tile_m)
    nz = (w4 != 0.0).any(axis=(1, 3))                    # (nk, nj) occupancy
    counts = nz.sum(axis=0).astype(np.int32)             # (nj,)
    nt = max(int(counts.max()), 1)
    kidx = np.zeros((nj, nt), dtype=np.int32)
    for j in range(nj):
        ks = np.nonzero(nz[:, j])[0].astype(np.int32)
        if ks.size == 0:
            ks = np.zeros((1,), np.int32)
        m = min(int(ks.size), nt)
        kidx[j, :m] = ks[:m]
        kidx[j, m:] = ks[m - 1]       # repeat last valid block: skipped, no fresh DMA
    blocked = np.transpose(w4, (0, 2, 1, 3)).reshape(nk * nj, tile_k, tile_m)
    return (jnp.asarray(blocked, jnp.bfloat16),
            jnp.asarray(kidx.reshape(-1)),
            jnp.asarray(counts),
            nt, nj)


# ----------------------------------------------------------------------------
# Pallas kernel (hot path): block-sparse K-tiled matmul + affine epilogue.
# ----------------------------------------------------------------------------
def _dc_matmul_kernel(kidx_ref, cnt_ref, x_ref, w_ref, off_ref, *rest,
                      nt, fuse_y):
    """out[j] = sum_over_nonzero_K_blocks( x[kblk] @ W^T[kblk, j] ) + off[j] (- y[j])."""
    if fuse_y:
        y_ref, o_ref, acc_ref = rest
    else:
        o_ref, acc_ref = rest

    j = pl.program_id(0)
    t = pl.program_id(1)

    @pl.when(t == 0)
    def _init():
        acc_ref[...] = jnp.zeros_like(acc_ref)

    @pl.when(t < cnt_ref[j])                     # skip all-zero K blocks
    def _accumulate():
        kblk = kidx_ref[j * nt + t]              # raw K-block index (SMEM scalar)
        acc_ref[...] += jnp.dot(x_ref[kblk], w_ref[0],
                                preferred_element_type=jnp.float32)

    @pl.when(t == pl.num_programs(1) - 1)
    def _epilogue():
        res = acc_ref[...] + off_ref[...]        # per-column offset (0 in padding)
        if fuse_y:
            res = res - y_ref[...].astype(jnp.float32)
        o_ref[...] = res.astype(o_ref.dtype)


def _block_sparse_affine_matmul(x, w_blocked, off_row, kidx, counts, nt, *,
                                tile_k, tile_m, y=None, out_dtype=jnp.float32,
                                vmem_limit_bytes):
    """out = x @ W^T + off [- y]   with W^T pre-blocked and block-sparse over K.

    x:(R, K_pad) bf16 — kept fully resident in VMEM (single DMA, constant
    index_map), dynamically indexed per K-block inside the kernel.
    w_blocked:(NK*NJ, tile_k, tile_m) bf16 — one contiguous DMA per grid step.
    kidx:(NJ*nt,) int32, counts:(NJ,) int32 — scalar-prefetched sparsity tables.
    Grid = (NJ output tiles ["parallel"], nt K-blocks ["arbitrary"])."""
    r_rows, k_pad = x.shape
    nkj, tk, tm = w_blocked.shape
    assert tk == tile_k and tm == tile_m and k_pad % tile_k == 0
    nk = k_pad // tile_k
    nj = nkj // nk
    n_pad = nj * tile_m
    assert off_row.shape == (1, n_pad)

    # Resident LHS, laid out by K-block so the kernel indexes the leading dim.
    x_blk = x.reshape(r_rows, nk, tile_k).transpose(1, 0, 2)   # (NK, R, tile_k)

    kernel = functools.partial(_dc_matmul_kernel, nt=nt, fuse_y=y is not None)

    def w_map(j, t, kidx_ref, cnt_ref):
        return (kidx_ref[j * nt + t] * nj + j, 0, 0)

    in_specs = [
        pl.BlockSpec((nk, r_rows, tile_k), lambda j, t, ki, ct: (0, 0, 0)),  # resident LHS
        pl.BlockSpec((1, tile_k, tile_m), w_map),                            # contiguous W^T tile
        pl.BlockSpec((1, tile_m), lambda j, t, ki, ct: (0, j)),              # per-column offset
    ]
    args = [kidx, counts, x_blk, w_blocked, off_row]
    if y is not None:
        in_specs.append(pl.BlockSpec((r_rows, tile_m), lambda j, t, ki, ct: (0, j)))
        args.append(y)

    return pl.pallas_call(
        kernel,
        out_shape=jax.ShapeDtypeStruct((r_rows, n_pad), out_dtype),
        grid_spec=pltpu.PrefetchScalarGridSpec(
            num_scalar_prefetch=2,
            grid=(nj, nt),
            in_specs=in_specs,
            out_specs=pl.BlockSpec((r_rows, tile_m), lambda j, t, ki, ct: (0, j)),
            scratch_shapes=[pltpu.VMEM((r_rows, tile_m), jnp.float32)],
        ),
        compiler_params=pltpu.CompilerParams(
            dimension_semantics=("parallel", "arbitrary"),
            vmem_limit_bytes=vmem_limit_bytes,
        ),
    )(*args)


# ----------------------------------------------------------------------------
# Operator + DCLsqFPB wrappers.
# ----------------------------------------------------------------------------
class FanbeamOperatorPallas:
    """Fan-beam Radon operator held as cached, pre-scaled, pre-transposed,
    tile-padded, pre-blocked bf16 matrices plus block-sparsity tables."""

    def __init__(self, n, angles, scale, d_source, n_detect, s_detect,
                 fwd_offset=0.0, inv_offset=0.0, inv_scale=1.0, n_samples=None,
                 planned_rows=8, tile_override=None):
        self.n = int(n)
        self.n_angles = int(angles.shape[0])
        self.n_detect = int(n_detect)
        self.P = self.n * self.n
        self.M = self.n_angles * self.n_detect
        self.fwd_offset = float(fwd_offset)
        self.inv_offset = float(inv_offset)

        budget = _chip_budget()
        if tile_override is not None:
            budget = dict(budget, max_tile_k=int(tile_override[0]),
                          max_tile_m=int(tile_override[1]))
        self.vmem_limit = budget["vmem_limit"]
        mtk, mtm = budget["max_tile_k"], budget["max_tile_m"]

        # One padded size + (K-role, N-role) tiles per dim.
        self.M_pad, M_ktile, M_ntile = _dim_plan(self.M, mtk, mtm)
        self.P_pad, P_ktile, P_ntile = _dim_plan(self.P, mtk, mtm)
        # Keep double-buffered W + resident LHS + epilogue operands in VMEM.
        P_ktile = _shrink_k_for_vmem(P_ktile, M_ntile, self.P_pad, planned_rows,
                                     self.vmem_limit, out_bytes=2)
        M_ktile = _shrink_k_for_vmem(M_ktile, P_ntile, self.M_pad, planned_rows,
                                     self.vmem_limit, out_bytes=4)
        self.P_ktile, self.P_ntile = P_ktile, P_ntile
        self.M_ktile, self.M_ntile = M_ktile, M_ntile

        n_samples = 2 * self.n if n_samples is None else int(n_samples)
        A = build_fanbeam_system_matrix(
            self.n, jnp.asarray(angles, jnp.float32), float(d_source),
            self.n_detect, float(s_detect), n_samples)
        Bmat = build_fbp_matrix(A, self.n, self.n_angles, self.n_detect,
                                float(s_detect))

        AsT = np.zeros((self.P_pad, self.M_pad), np.float32)
        AsT[:self.P, :self.M] = np.asarray(float(scale) * A).T
        BsT = np.zeros((self.M_pad, self.P_pad), np.float32)
        BsT[:self.M, :self.P] = np.asarray(float(inv_scale) * Bmat).T

        # Pre-blocked contiguous tiles + block-sparsity tables (built once).
        (self.A_blocked, self.A_kidx, self.A_counts, self.A_nt, self.A_nj) = \
            _preblock_and_tables(AsT, self.P_ktile, self.M_ntile)
        (self.B_blocked, self.B_kidx, self.B_counts, self.B_nt, self.B_nj) = \
            _preblock_and_tables(BsT, self.M_ktile, self.P_ntile)

        # Per-column offsets (zero in padded columns -> no offset leakage).
        self.fwd_off_row = jnp.zeros((1, self.M_pad), jnp.float32
                                     ).at[:, :self.M].set(self.fwd_offset)
        self.inv_off_row = jnp.zeros((1, self.P_pad), jnp.float32
                                     ).at[:, :self.P].set(self.inv_offset)

        # Dense padded bf16 copies — used only by the pure-JAX test reference.
        self.AsT_dense = jnp.asarray(AsT, jnp.bfloat16)
        self.BsT_dense = jnp.asarray(BsT, jnp.bfloat16)


class DCLsqFPBPallas:
    """forward((y, x)) = operator.inv(operator(x) - y), fused into two kernels."""

    def __init__(self, operator):
        self.op = operator

    def _flatten_pad(self, y, x):
        op = self.op
        B, C, H, W = x.shape
        BC = B * C
        R = _round_up(max(BC, SUBLANE), SUBLANE)
        x_flat = x.reshape(BC, op.P).astype(jnp.float32)
        y_flat = y.reshape(BC, op.M).astype(jnp.float32)
        x_pad = jnp.zeros((R, op.P_pad), jnp.float32).at[:BC, :op.P].set(x_flat)
        y_pad = jnp.zeros((R, op.M_pad), jnp.float32).at[:BC, :op.M].set(y_flat)
        return x_pad.astype(jnp.bfloat16), y_pad, (B, C, BC)

    def __call__(self, inp):
        y, x = inp
        op = self.op
        x_pad, y_pad, (B, C, BC) = self._flatten_pad(y, x)
        # residual = op(x) - y   (forward projection, "-y" fused in epilogue)
        residual = _block_sparse_affine_matmul(
            x_pad, op.A_blocked, op.fwd_off_row, op.A_kidx, op.A_counts,
            op.A_nt, tile_k=op.P_ktile, tile_m=op.M_ntile, y=y_pad,
            out_dtype=jnp.bfloat16, vmem_limit_bytes=op.vmem_limit)
        # out = op.inv(residual)  (filtered backprojection)
        out_pad = _block_sparse_affine_matmul(
            residual, op.B_blocked, op.inv_off_row, op.B_kidx, op.B_counts,
            op.B_nt, tile_k=op.M_ktile, tile_m=op.P_ntile,
            out_dtype=jnp.float32, vmem_limit_bytes=op.vmem_limit)
        return out_pad[:BC, :op.P].reshape(B, C, op.n, op.n)

    def reference(self, inp):
        """Pure-JAX reference mirroring the kernel's bf16 rounding (tests only)."""
        y, x = inp
        op = self.op
        x_pad, y_pad, (B, C, BC) = self._flatten_pad(y, x)
        hp = jax.lax.Precision.HIGHEST
        r = (jnp.dot(x_pad.astype(jnp.float32), op.AsT_dense.astype(jnp.float32),
                     precision=hp) + op.fwd_off_row - y_pad)
        r = r.astype(jnp.bfloat16).astype(jnp.float32)
        o = (jnp.dot(r, op.BsT_dense.astype(jnp.float32), precision=hp)
             + op.inv_off_row)
        return o[:BC, :op.P].reshape(B, C, op.n, op.n)


if __name__ == "__main__":
    # Small, deterministic setup consistent with the fan-beam operator config.
    n = 16                                   # image is n x n
    n_angles = 8
    n_detect = 16                            # M = 128, P = 256
    s_detect = 2.0
    d_source = 2.0 * n
    scale = 0.05
    angles = jnp.linspace(0.0, 2.0 * jnp.pi, n_angles, endpoint=False)

    key = jax.random.PRNGKey(0)
    kx, ky = jax.random.split(key)
    x = jax.random.normal(kx, (2, 1, n, n), dtype=jnp.float32)              # NCHW
    y = jax.random.normal(ky, (2, 1, n_angles, n_detect), dtype=jnp.float32)

    ok = True
    # (a) per-chip auto tiles; (b) forced 128x128 tiles so the multi-block
    # block-sparse path (dynamic kidx index_map, count-based skip) is exercised
    # even at this toy problem size.
    for override in (None, (128, 128)):
        op = FanbeamOperatorPallas(n, angles, scale, d_source, n_detect,
                                   s_detect, fwd_offset=0.1, inv_offset=0.05,
                                   tile_override=override)
        dc = DCLsqFPBPallas(op)
        out = jax.block_until_ready(dc((y, x)))
        assert out.shape == (2, 1, n, n)
        ref = dc.reference((y, x))
        ok = ok and bool(jnp.allclose(out, ref, atol=1e-2, rtol=1e-2))

    assert ok
    print("KERNEL_OK")
</pallas_src>

<mosaic_0001>
module attributes {stable_mosaic.version = 11 : i64} {
  func.func @_dc_matmul_kernel(%arg0: i32, %arg1: i32, %arg2: memref<1xi32, #tpu.memory_space<smem>>, %arg3: memref<1xi32, #tpu.memory_space<smem>>, %arg4: memref<1x8x256xbf16, #tpu.memory_space<vmem>>, %arg5: memref<1x256x128xbf16, #tpu.memory_space<vmem>>, %arg6: memref<1x128xf32, #tpu.memory_space<vmem>>, %arg7: memref<8x128xf32, #tpu.memory_space<vmem>>, %arg8: memref<8x128xbf16, #tpu.memory_space<vmem>>, %arg9: memref<8x128xf32, #tpu.memory_space<vmem>>) attributes {dimension_semantics = [#tpu.dimension_semantics<parallel>, #tpu.dimension_semantics<arbitrary>], iteration_bounds = array<i64: 1, 1>, scalar_prefetch = 2 : i64, scratch_operands = 1 : i64, tpu.core_type = #tpu.core_type<tc>, window_params = [{pipeline_mode = #tpu.pipeline_mode<synchronous>, transform_indices = @transform_0, window_bounds = array<i64: 1, 8, 256>}, {transform_indices = @transform_1, window_bounds = array<i64: 1, 256, 128>}, {transform_indices = @transform_2, window_bounds = array<i64: 1, 128>}, {transform_indices = @transform_3, window_bounds = array<i64: 8, 128>}, {transform_indices = @transform_4, window_bounds = array<i64: 8, 128>}]} {
    %c0_i32 = arith.constant 0 : i32
    %0 = arith.cmpi eq, %arg1, %c0_i32 : i32
    %1 = arith.extui %0 : i1 to i32
    %c0_i32_0 = arith.constant 0 : i32
    %2 = arith.cmpi ne, %1, %c0_i32_0 : i32
    scf.if %2 {
      %cst = arith.constant 0.000000e+00 : f32
      %11 = vector.broadcast %cst : f32 to vector<8x128xf32>
      %c0 = arith.constant 0 : index
      %c0_4 = arith.constant 0 : index
      %12 = vector.load %arg9[%c0, %c0_4] : memref<8x128xf32, #tpu.memory_space<vmem>>, vector<8x128xf32>
      tpu.vector_store %arg9[%c0, %c0_4], %11 {strides = array<i32>} : memref<8x128xf32, #tpu.memory_space<vmem>>, vector<8x128xf32>,
    } else {
    }
    %3 = arith.index_cast %arg0 : i32 to index
    %4 = memref.load %arg3[%3] : memref<1xi32, #tpu.memory_space<smem>>
    %5 = arith.cmpi slt, %arg1, %4 : i32
    %6 = arith.extui %5 : i1 to i32
    %c0_i32_1 = arith.constant 0 : i32
    %7 = arith.cmpi ne, %6, %c0_i32_1 : i32
    scf.if %7 {
      %c1_i32 = arith.constant 1 : i32
      %11 = arith.muli %arg0, %c1_i32 : i32
      %12 = arith.addi %11, %arg1 : i32
      %13 = arith.index_cast %12 : i32 to index
      %14 = memref.load %arg2[%13] : memref<1xi32, #tpu.memory_space<smem>>
      %c0 = arith.constant 0 : index
      %c0_4 = arith.constant 0 : index
      %15 = vector.load %arg9[%c0, %c0_4] : memref<8x128xf32, #tpu.memory_space<vmem>>, vector<8x128xf32>
      %16 = arith.index_cast %14 : i32 to index
      %c0_5 = arith.constant 0 : index
      %c0_6 = arith.constant 0 : index
      %17 = vector.load %arg4[%16, %c0_5, %c0_6] : memref<1x8x256xbf16, #tpu.memory_space<vmem>>, vector<1x8x256xbf16>
      %18 = vector.shape_cast %17 : vector<1x8x256xbf16> to vector<8x256xbf16>
      %c0_7 = arith.constant 0 : index
      %c0_8 = arith.constant 0 : index
      %c0_9 = arith.constant 0 : index
      %19 = vector.load %arg5[%c0_7, %c0_8, %c0_9] : memref<1x256x128xbf16, #tpu.memory_space<vmem>>, vector<1x256x128xbf16>
      %20 = vector.shape_cast %19 : vector<1x256x128xbf16> to vector<256x128xbf16>
      %cst = arith.constant dense<0.000000e+00> : vector<8x128xf32>
      %21 = tpu.matmul %18, %20, %cst {dimension_numbers = #tpu.dot_dimension_numbers<[1], [0], [0], [1], [0, 0, 1, 1], [], []>} : vector<8x256xbf16>, vector<256x128xbf16>, vector<8x128xf32> -> vector<8x128xf32>
      %22 = arith.addf %15, %21 : vector<8x128xf32>
      %c0_10 = arith.constant 0 : index
      %c0_11 = arith.constant 0 : index
      %23 = vector.load %arg9[%c0_10, %c0_11] : memref<8x128xf32, #tpu.memory_space<vmem>>, vector<8x128xf32>
      tpu.vector_store %arg9[%c0_10, %c0_11], %22 {strides = array<i32>} : memref<8x128xf32, #tpu.memory_space<vmem>>, vector<8x128xf32>,
    } else {
    }
    %c0_i32_2 = arith.constant 0 : i32
    %8 = arith.cmpi eq, %arg1, %c0_i32_2 : i32
    %9 = arith.extui %8 : i1 to i32
    %c0_i32_3 = arith.constant 0 : i32
    %10 = arith.cmpi ne, %9, %c0_i32_3 : i32
    scf.if %10 {
      %c0 = arith.constant 0 : index
      %c0_4 = arith.constant 0 : index
      %11 = vector.load %arg9[%c0, %c0_4] : memref<8x128xf32, #tpu.memory_space<vmem>>, vector<8x128xf32>
      %c0_5 = arith.constant 0 : index
      %c0_6 = arith.constant 0 : index
      %12 = vector.load %arg6[%c0_5, %c0_6] : memref<1x128xf32, #tpu.memory_space<vmem>>, vector<1x128xf32>
      %13 = vector.broadcast %12 : vector<1x128xf32> to vector<8x128xf32>
      %14 = arith.addf %11, %13 : vector<8x128xf32>
      %c0_7 = arith.constant 0 : index
      %c0_8 = arith.constant 0 : index
      %15 = vector.load %arg7[%c0_7, %c0_8] : memref<8x128xf32, #tpu.memory_space<vmem>>, vector<8x128xf32>
      %16 = arith.subf %14, %15 : vector<8x128xf32>
      %17 = arith.truncf %16 : vector<8x128xf32> to vector<8x128xbf16>
      %c0_9 = arith.constant 0 : index
      %c0_10 = arith.constant 0 : index
      %18 = vector.load %arg8[%c0_9, %c0_10] : memref<8x128xbf16, #tpu.memory_space<vmem>>, vector<8x128xbf16>
      tpu.vector_store %arg8[%c0_9, %c0_10], %17 {strides = array<i32>} : memref<8x128xbf16, #tpu.memory_space<vmem>>, vector<8x128xbf16>,
    } else {
    }
    return
  }
  func.func @transform_0(%arg0: i32, %arg1: i32, %arg2: memref<1xi32, #tpu.memory_space<smem>>, %arg3: memref<1xi32, #tpu.memory_space<smem>>) -> (i32, i32, i32) {
    %c0_i32 = arith.constant 0 : i32
    %c0_i32_0 = arith.constant 0 : i32
    %c0_i32_1 = arith.constant 0 : i32
    %c0_i32_2 = arith.constant 0 : i32
    return %c0_i32, %c0_i32_0, %c0_i32_1 : i32, i32, i32
  }
  func.func @transform_1(%arg0: i32, %arg1: i32, %arg2: memref<1xi32, #tpu.memory_space<smem>>, %arg3: memref<1xi32, #tpu.memory_space<smem>>) -> (i32, i32, i32) {
    %c1_i32 = arith.constant 1 : i32
    %0 = arith.muli %arg0, %c1_i32 : i32
    %1 = arith.addi %0, %arg1 : i32
    %2 = arith.index_cast %1 : i32 to index
    %3 = memref.load %arg2[%2] : memref<1xi32, #tpu.memory_space<smem>>
    %c1_i32_0 = arith.constant 1 : i32
    %4 = arith.muli %3, %c1_i32_0 : i32
    %5 = arith.addi %4, %arg0 : i32
    %c0_i32 = arith.constant 0 : i32
    %c0_i32_1 = arith.constant 0 : i32
    %c0_i32_2 = arith.constant 0 : i32
    return %5, %c0_i32, %c0_i32_1 : i32, i32, i32
  }
  func.func @transform_2(%arg0: i32, %arg1: i32, %arg2: memref<1xi32, #tpu.memory_space<smem>>, %arg3: memref<1xi32, #tpu.memory_space<smem>>) -> (i32, i32) {
    %c0_i32 = arith.constant 0 : i32
    %c0_i32_0 = arith.constant 0 : i32
    return %c0_i32, %arg0 : i32, i32
  }
  func.func @transform_3(%arg0: i32, %arg1: i32, %arg2: memref<1xi32, #tpu.memory_space<smem>>, %arg3: memref<1xi32, #tpu.memory_space<smem>>) -> (i32, i32) {
    %c0_i32 = arith.constant 0 : i32
    %c0_i32_0 = arith.constant 0 : i32
    return %c0_i32, %arg0 : i32, i32
  }
  func.func @transform_4(%arg0: i32, %arg1: i32, %arg2: memref<1xi32, #tpu.memory_space<smem>>, %arg3: memref<1xi32, #tpu.memory_space<smem>>) -> (i32, i32) {
    %c0_i32 = arith.constant 0 : i32
    %c0_i32_0 = arith.constant 0 : i32
    return %c0_i32, %arg0 : i32, i32
  }
}

</mosaic_0001>

<llo_original>
// kernel: tpu_custom_call.1
$region0: #{tpu_custom_call.1}
  #allocation0 [shape = 'u32[]', space=smem, size = 0x4, offset = 0x4, fixed_abs, tag = 'smem constant byte address 0x4 - core index']
  #allocation1 [shape = 'u32[144,128]{1,0:T(1,128)}', space=vmem, size = 0x12000, scoped, tag = 'internal scratch']
  #allocation2 [shape = 'f32[8,128]{1,0:T(8,128)}', space=vmem, size = 0x1000, scoped, tag = 'scratch operand']
  #allocation3 [shape = 's32[1]{0}', space=sflag, size = 0x4, scoped, tag = 'scoped memory for tpu_custom_call.1']
  #allocation4 [shape = 's32[1]{0:T(128)S(6)}', space=smem, size = 0x200, scoped, tag = 'prefetched SMEM operand 0']
  #allocation5 [shape = 's32[1]{0:T(128)S(6)}', space=smem, size = 0x200, scoped, tag = 'prefetched SMEM operand 1']
  %s0 = inlined_call_operand.<no memory space> [shape: s32[1], index: 0, kind: input, shape index: {}]
  %s1 = inlined_call_operand.<no memory space> [shape: s32[1], index: 1, kind: input, shape index: {}]
  %s2 = inlined_call_operand.hbm [shape: bf16[1,8,256], index: 2, kind: input, shape index: {}]
  %s3 = inlined_call_operand.hbm [shape: bf16[1,256,128], index: 3, kind: input, shape index: {}]
  %s4 = inlined_call_operand.vmem [shape: f32[1,128], index: 4, kind: input, shape index: {}]
  %s5 = inlined_call_operand.vmem [shape: f32[8,128], index: 5, kind: input, shape index: {}]
  %s6 = inlined_call_operand.hbm [shape: bf16[8,128], index: 6, kind: output, shape index: {}]
  %s7 = sld [smem:[#allocation0]]
  $region46: #{tpu_custom_call.1} parent=0
    _
  %s9 = ssub.s32 1, %s7
  %s10 = scalar_select 0, %s9, %s7
  %11 = sst [smem:[#allocation4]] %s0
  %12 = sst [smem:[#allocation5]] %s1
  $region1: #{tpu_custom_call.1} parent=0
    #allocation6 [shape = 'u8[4096]{0}', space=vmem, size = 0x1000, scoped, tag = 'input window, operand 2, single buffered']
    #allocation7 [shape = 's32[1]{0}', space=sflag, size = 0x4, scoped, tag = 'scoped memory for tpu_custom_call.1']
    #allocation8 [shape = 's32[1]{0}', space=sflag, size = 0x4, scoped, tag = 'scoped memory for tpu_custom_call.1']
    #allocation9 [shape = 'u8[65536]{0}', space=vmem, size = 0x10000, scoped, tag = 'input window, operand 3, single buffered']
    #allocation10 [shape = 's32[1]{0}', space=sflag, size = 0x4, scoped, tag = 'scoped memory for tpu_custom_call.1']
    #allocation11 [shape = 'u8[2048]{0}', space=vmem, size = 0x800, scoped, tag = 'output window, operand 0, single buffered']
    %13 = vsyncpa [#allocation7], 0
    %14 = vsyncpa [#allocation10], 0
    %15 = vsyncpa [#allocation8], 0
    // Predicated region
    $region2: #{tpu_custom_call.1} parent=1 // pred_check
      _
    $region3: #{tpu_custom_call.1} parent=1 // pred_check_branch
      %17 = sbr.rel (0) target = $region5
    $region4: #{tpu_custom_call.1} parent=1 // pred_region
      %s19 = ssub.s32 128, 128
      %20 = vsyncadd [#allocation7], %s19
      %s22 = sshll.u32 [#allocation6], 4
      %s23 = int_to_ptr.vmem [resolvable:$true] %s22
      %25 = dma.hbm_to_vmem [thread:$0]  %s2, 128, %s23, [#allocation7]
    $region5: #{tpu_custom_call.1} parent=1 // pred_fallthru
      _
    // Predicated region
    $region6: #{tpu_custom_call.1} parent=1 // pred_check
      _
    $region7: #{tpu_custom_call.1} parent=1 // pred_check_branch
      %27 = sbr.rel (0) target = $region9
    $region8: #{tpu_custom_call.1} parent=1 // pred_region
      %s28 = sadd.s32 0, 0
      %s29 = sld [smem:[#allocation4 + %s28]]
      %s30 = sadd.s32 %s29, 0
      %s32 = ssub.s32 2048, 2048
      %33 = vsyncadd [#allocation10], %s32
      %s34 = smul.addr %s30, 32
      %s35 = smul.addr %s34, 64
      %s36 = scalar_lea.hbm %s3, %s35
      %s37 = sshll.u32 [#allocation9], 4
      %s38 = int_to_ptr.vmem [resolvable:$true] %s37
      %43 = dma.hbm_to_vmem [thread:$0]  %s36, 2048, %s38, [#allocation10], 64, 64, 4
    $region9: #{tpu_custom_call.1} parent=1 // pred_fallthru
      _
    // Predicated region
    $region10: #{tpu_custom_call.1} parent=1 // pred_check
      _
    $region11: #{tpu_custom_call.1} parent=1 // pred_check_branch
      %45 = sbr.rel (0) target = $region13
    $region12: #{tpu_custom_call.1} parent=1 // pred_region
      _
    $region13: #{tpu_custom_call.1} parent=1 // pred_fallthru
      _
    // Predicated region
    $region14: #{tpu_custom_call.1} parent=1 // pred_check
      _
    $region15: #{tpu_custom_call.1} parent=1 // pred_check_branch
      %47 = sbr.rel (0) target = $region17
    $region16: #{tpu_custom_call.1} parent=1 // pred_region
      _
    $region17: #{tpu_custom_call.1} parent=1 // pred_fallthru
      _
    // Predicated region
    $region18: #{tpu_custom_call.1} parent=1 // pred_check
      _
    $region19: #{tpu_custom_call.1} parent=1 // pred_check_branch
      %49 = sbr.rel (0) target = $region21
    $region20: #{tpu_custom_call.1} parent=1 // pred_region
      %50 = dma.done [#allocation7], 128
    $region21: #{tpu_custom_call.1} parent=1 // pred_fallthru
      _
    // Predicated region
    $region22: #{tpu_custom_call.1} parent=1 // pred_check
      _
    $region23: #{tpu_custom_call.1} parent=1 // pred_check_branch
      %52 = sbr.rel (0) target = $region25
    $region24: #{tpu_custom_call.1} parent=1 // pred_region
      %53 = dma.done [#allocation10], 2048
    $region25: #{tpu_custom_call.1} parent=1 // pred_fallthru
      _
    %s54 = sadd.s32 0, 0
    %s55 = sld [smem:[#allocation4 + %s54]]
    %s56 = sadd.s32 %s55, 0
    %p58 = scmp.eq.s32.totalorder 0, 0
    // Predicated region
    $region26: #{tpu_custom_call.1} parent=1 // pred_check
      %p59 = pneg %p58
    $region27: #{tpu_custom_call.1} parent=1 // pred_check_branch
      %61 = sbr.rel (%p59) target = $region29
    $region28: #{tpu_custom_call.1} parent=1 // pred_region
      %62 = vst [vmem:[#allocation2] sm:$0xff] 0.0
    $region29: #{tpu_custom_call.1} parent=1 // pred_fallthru
      _
    %s63 = sld [smem:[#allocation5]]
    %p64 = scmp.lt.s32.totalorder 0, %s63
    // Predicated region
    $region30: #{tpu_custom_call.1} parent=1 // pred_check
      %p65 = pneg %p64
    $region31: #{tpu_custom_call.1} parent=1 // pred_check_branch
      %67 = sbr.rel (%p65) target = $region33
    $region32: #{tpu_custom_call.1} parent=1 // pred_region
      %s68 = sadd.s32 0, 0
      %s69 = sld [smem:[#allocation4 + %s68]]
      %v70 = vld [vmem:[#allocation2] sm:$0xff]
      %s71 = smul.u32 %s69, 2
      %s72 = smul.addr %s71, 4
      %s73 = scalar_lea.vmem [#allocation6], %s72
      %v74 = vld [vmem:[%s73] sm:$0xff]
      %v75 = vld [vmem:[#allocation9] sm:$0xf]
      %v76 = vld [vmem:[#allocation9 + $0x4] sm:$0xf]
      %v77 = vld [vmem:[#allocation9 + $0x8] sm:$0xf]
      %v78 = vld [vmem:[#allocation9 + $0xc] sm:$0xf]
      %v79 = vld [vmem:[#allocation9 + $0x10] sm:$0xf]
      %v80 = vld [vmem:[#allocation9 + $0x14] sm:$0xf]
      %v81 = vld [vmem:[#allocation9 + $0x18] sm:$0xf]
      %v82 = vld [vmem:[#allocation9 + $0x1c] sm:$0xf]
      %v83 = vld [vmem:[#allocation9 + $0x20] sm:$0xf]
      %v84 = vld [vmem:[#allocation9 + $0x24] sm:$0xf]
      %v85 = vld [vmem:[#allocation9 + $0x28] sm:$0xf]
      %v86 = vld [vmem:[#allocation9 + $0x2c] sm:$0xf]
      %v87 = vld [vmem:[#allocation9 + $0x30] sm:$0xf]
      %v88 = vld [vmem:[#allocation9 + $0x34] sm:$0xf]
      %v89 = vld [vmem:[#allocation9 + $0x38] sm:$0xf]
      %v90 = vld [vmem:[#allocation9 + $0x3c] sm:$0xf]
      %v91 = vld [vmem:[#allocation9 + $0x40] sm:$0xf]
      %v92 = vld [vmem:[#allocation9 + $0x44] sm:$0xf]
      %v93 = vld [vmem:[#allocation9 + $0x48] sm:$0xf]
      %v94 = vld [vmem:[#allocation9 + $0x4c] sm:$0xf]
      %v95 = vld [vmem:[#allocation9 + $0x50] sm:$0xf]
      %v96 = vld [vmem:[#allocation9 + $0x54] sm:$0xf]
      %v97 = vld [vmem:[#allocation9 + $0x58] sm:$0xf]
      %v98 = vld [vmem:[#allocation9 + $0x5c] sm:$0xf]
      %v99 = vld [vmem:[#allocation9 + $0x60] sm:$0xf]
      %v100 = vld [vmem:[#allocation9 + $0x64] sm:$0xf]
      %v101 = vld [vmem:[#allocation9 + $0x68] sm:$0xf]
      %v102 = vld [vmem:[#allocation9 + $0x6c] sm:$0xf]
      %v103 = vld [vmem:[#allocation9 + $0x70] sm:$0xf]
      %v104 = vld [vmem:[#allocation9 + $0x74] sm:$0xf]
      %v105 = vld [vmem:[#allocation9 + $0x78] sm:$0xf]
      %v106 = vld [vmem:[#allocation9 + $0x7c] sm:$0xf]
      %v108 = vunpack.c.l.b16 %v74
      %v109 = vunpack.c.h.b16 %v74
      %v110 = vpack.c.b16 %v108, %v108
      %v111 = vpack.c.b16 %v109, %v109
      %v146 = vunpack.c.l.b16 %v75
      %v147 = vunpack.c.l.b16 %v76
      %v148 = vunpack.c.l.b16 %v77
      %v149 = vunpack.c.l.b16 %v78
      %v150 = vunpack.c.l.b16 %v79
      %v151 = vunpack.c.l.b16 %v80
      %v152 = vunpack.c.l.b16 %v81
      %v153 = vunpack.c.l.b16 %v82
      %v154 = vunpack.c.l.b16 %v83
      %v155 = vunpack.c.l.b16 %v84
      %v156 = vunpack.c.l.b16 %v85
      %v157 = vunpack.c.l.b16 %v86
      %v158 = vunpack.c.l.b16 %v87
      %v159 = vunpack.c.l.b16 %v88
      %v160 = vunpack.c.l.b16 %v89
      %v161 = vunpack.c.l.b16 %v90
      %v162 = vunpack.c.l.b16 %v91
      %v163 = vunpack.c.l.b16 %v92
      %v164 = vunpack.c.l.b16 %v93
      %v165 = vunpack.c.l.b16 %v94
      %v166 = vunpack.c.l.b16 %v95
      %v167 = vunpack.c.l.b16 %v96
      %v168 = vunpack.c.l.b16 %v97
      %v169 = vunpack.c.l.b16 %v98
      %v170 = vunpack.c.l.b16 %v99
      %v171 = vunpack.c.l.b16 %v100
      %v172 = vunpack.c.l.b16 %v101
      %v173 = vunpack.c.l.b16 %v102
      %v174 = vunpack.c.l.b16 %v103
      %v175 = vunpack.c.l.b16 %v104
      %v176 = vunpack.c.l.b16 %v105
      %v177 = vunpack.c.l.b16 %v106
      %v178 = vpack.c.b16 %v147, %v146
      %v179 = vpack.c.b16 %v149, %v148
      %v180 = vpack.c.b16 %v151, %v150
      %v181 = vpack.c.b16 %v153, %v152
      %v182 = vpack.c.b16 %v155, %v154
      %v183 = vpack.c.b16 %v157, %v156
      %v184 = vpack.c.b16 %v159, %v158
      %v185 = vpack.c.b16 %v161, %v160
      %v186 = vpack.c.b16 %v163, %v162
      %v187 = vpack.c.b16 %v165, %v164
      %v188 = vpack.c.b16 %v167, %v166
      %v189 = vpack.c.b16 %v169, %v168
      %v190 = vpack.c.b16 %v171, %v170
      %v191 = vpack.c.b16 %v173, %v172
      %v192 = vpack.c.b16 %v175, %v174
      %v193 = vpack.c.b16 %v177, %v176
      %210 = vmatprep.subr.bf16.mxu0 0
      %211 = vmatpush1.bf16.msra.mxu0 %v178
      %212 = vmatprep.subr.bf16.mxu0 0
      %213 = vmatpush1.bf16.msra.mxu0 %v179
      %214 = vmatprep.subr.bf16.mxu0 0
      %215 = vmatpush1.bf16.msra.mxu0 %v180
      %216 = vmatprep.subr.bf16.mxu0 0
      %217 = vmatpush1.bf16.msra.mxu0 %v181
      %218 = vmatprep.subr.bf16.mxu0 0
      %219 = vmatpush1.bf16.msra.mxu0 %v182
      %220 = vmatprep.subr.bf16.mxu0 0
      %221 = vmatpush1.bf16.msra.mxu0 %v183
      %222 = vmatprep.subr.bf16.mxu0 0
      %223 = vmatpush1.bf16.msra.mxu0 %v184
      %224 = vmatprep.subr.bf16.mxu0 0
      %225 = vmatpush1.bf16.msra.mxu0 %v185
      %226 = vmatprep.subr.bf16.mxu0 0
      %227 = vmatpush1.bf16.msra.mxu0 %v186
      %228 = vmatprep.subr.bf16.mxu0 0
      %229 = vmatpush1.bf16.msra.mxu0 %v187
      %230 = vmatprep.subr.bf16.mxu0 0
      %231 = vmatpush1.bf16.msra.mxu0 %v188
      %232 = vmatprep.subr.bf16.mxu0 0
      %233 = vmatpush1.bf16.msra.mxu0 %v189
      %234 = vmatprep.subr.bf16.mxu0 0
      %235 = vmatpush1.bf16.msra.mxu0 %v190
      %236 = vmatprep.subr.bf16.mxu0 0
      %237 = vmatpush1.bf16.msra.mxu0 %v191
      %238 = vmatprep.subr.bf16.mxu0 0
      %239 = vmatpush1.bf16.msra.mxu0 %v192
      %240 = vmatprep.subr.bf16.mxu0 0
      %241 = vmatpush1.bf16.msra.mxu0 %v193
      %242 = vmatprep.mubr.bf16.mxu0 %v111
      %243 = vmatmul.mubr.bf16.gmra.mrb[0].mxu0 %v110
      %v244 = vpop.f32.mrb[0].mxu0
      %v245 = vadd.f32 0.0, %v244
      %v246 = vpop.f32.mrb[0].mxu0
      %v247 = vpop.f32.mrb[0].mxu0
      %v248 = vpop.f32.mrb[0].mxu0
      %249 = vdwg.mxu0
      %v250 = vadd.f32 %v70, %v245
      %251 = vst [vmem:[#allocation2] sm:$0xff] %v250
    $region33: #{tpu_custom_call.1} parent=1 // pred_fallthru
      _
    // Predicated region
    $region34: #{tpu_custom_call.1} parent=1 // pred_check
      %p252 = pneg %p58
    $region35: #{tpu_custom_call.1} parent=1 // pred_check_branch
      %254 = sbr.rel (%p252) target = $region37
    $region36: #{tpu_custom_call.1} parent=1 // pred_region
      %v255 = vld [vmem:[#allocation2] sm:$0xff]
      %v256 = vld [vmem:[%s4] sm:$0x1]
      %v258 = vlaneseq
      %v259 = vshrl.u32 %v258, 7
      %v260 = vsub.s32 0, %v259
      %v261 = vrot.slane %v256, %v260
      %v263 = vadd.f32 %v255, %v261
      %v264 = vld [vmem:[%s5] sm:$0xff]
      %v265 = vsub.f32 %v263, %v264
      %v266 = vpack.c.bf16 %v265, %v265
      %267 = vst [vmem:[#allocation11] sm:$0xf] %v266
    $region37: #{tpu_custom_call.1} parent=1 // pred_fallthru
      _
    // Predicated region
    $region38: #{tpu_custom_call.1} parent=1 // pred_check
      _
    $region39: #{tpu_custom_call.1} parent=1 // pred_check_branch
      %269 = sbr.rel (0) target = $region41
    $region40: #{tpu_custom_call.1} parent=1 // pred_region
      %s271 = ssub.s32 64, 64
      %272 = vsyncadd [#allocation8], %s271
      %s274 = sshll.u32 [#allocation11], 4
      %s275 = int_to_ptr.vmem [resolvable:$true] %s274
      %277 = dma.vmem_to_hbm [thread:$0]  %s275, 64, %s6, [#allocation8]
    $region41: #{tpu_custom_call.1} parent=1 // pred_fallthru
      _
    // Predicated region
    $region42: #{tpu_custom_call.1} parent=1 // pred_check
      _
    $region43: #{tpu_custom_call.1} parent=1 // pred_check_branch
      %279 = sbr.rel (0) target = $region45
    $region44: #{tpu_custom_call.1} parent=1 // pred_region
      %280 = dma.done [#allocation8], 64
    $region45: #{tpu_custom_call.1} parent=1 // pred_fallthru
      _
    %281 = vsyncpa [#allocation7], 1
    %282 = vsyncpa [#allocation10], 1
    %283 = vsyncpa [#allocation8], 1

</llo_original>
